<compile_context>
chip_gen: v6e
topology: v6e:2x2x1
jax: 0.10.0
libtpu: 0.0.40
codegen_flags: <defaults>
</compile_context>

<pallas_src>
import jax
import jax.numpy as jnp
from jax import lax
from jax.experimental import pallas as pl
from jax.experimental.pallas import tpu as pltpu


def _cbam_kernel(x_ref, w1t_ref, w2t_ref, conv_ref, out_ref):
    """One grid step: a lane-dense (bt, C, HW) slab, fully batched.

    x_ref    : (bt, C, HW)  VMEM   input block
    w1t_ref  : (C, Cr)      VMEM   Conv2d(C, Cr, 1, bias=False).weight[:,:,0,0].T
    w2t_ref  : (Cr, C)      VMEM   Conv2d(Cr, C, 1, bias=False).weight[:,:,0,0].T
    conv_ref : (2*HW, HW)   VMEM   bf16, 7x7 spatial conv flattened to one matmul
    out_ref  : (bt, C, HW)  VMEM   output block
    """
    bt, C, HW = x_ref.shape
    f32 = jnp.float32
    inv_hw = 1.0 / HW
    inv_c = 1.0 / C

    x = x_ref[...].astype(f32)                                    # (bt, C, HW)

    # ---------------- channel attention (all images at once) ----------------
    # The MLP is linear (no bias, no ReLU in the reference module).  Stacking
    # [max_pool ; avg_pool] keeps a single pair of matmuls per block while
    # remaining valid even if a nonlinearity were inserted between the convs.
    maxp = jnp.max(x, axis=2)                                     # (bt, C)  XLU lane reduce
    avgp = jnp.sum(x, axis=2) * inv_hw                            # (bt, C)
    pooled = jnp.concatenate([maxp, avgp], axis=0)                # (2*bt, C)
    h = jnp.dot(pooled, w1t_ref[...], preferred_element_type=f32)  # (2*bt, Cr)
    m = jnp.dot(h, w2t_ref[...], preferred_element_type=f32)       # (2*bt, C)
    ch = jax.nn.sigmoid(m[:bt] + m[bt:])                          # (bt, C)
    xc = x * ch[:, :, None]                                       # (bt, C, HW)  lane-broadcast

    # ---------------- spatial attention (one matmul per block) --------------
    mx = jnp.max(xc, axis=1)                                      # (bt, HW)  XLU sublane reduce
    av = jnp.sum(xc, axis=1) * inv_c                              # (bt, HW)  XLU sublane reduce
    cat = jnp.concatenate([mx, av], axis=1).astype(jnp.bfloat16)  # (bt, 2*HW) 128-aligned
    sp = jax.nn.sigmoid(
        jnp.dot(cat, conv_ref[...], preferred_element_type=f32))  # (bt, HW)  7x7 conv, bf16-in f32-acc

    out_ref[...] = (xc * sp[:, None, :]).astype(out_ref.dtype)    # sublane-broadcast, lane-dense store


def _spatial_conv_matrix(wk, H, W):
    """Flatten Conv2d(2, 1, K, padding=K//2, bias=False) over an HxW map into a
    (2*H*W, H*W) matrix M so that  out_flat = [max_flat | avg_flat] @ M."""
    K = wk.shape[-1]
    P = K // 2
    w = wk[0].astype(jnp.float32)                                   # (2, K, K)
    dy = jnp.arange(H)[:, None] - jnp.arange(H)[None, :] + P        # (H, H): dy[yp, yq]
    dx = jnp.arange(W)[:, None] - jnp.arange(W)[None, :] + P        # (W, W): dx[xp, xq]
    vy = (dy >= 0) & (dy < K)
    vx = (dx >= 0) & (dx < K)
    dyc = jnp.clip(dy, 0, K - 1)
    dxc = jnp.clip(dx, 0, K - 1)
    m = w[:, dyc[:, None, :, None], dxc[None, :, None, :]]          # (2, H, W, H, W)
    valid = vy[:, None, :, None] & vx[None, :, None, :]             # (H, W, H, W)
    m = jnp.where(valid[None], m, 0.0)
    return m.reshape(2 * H * W, H * W)                              # row = c*HW + p, col = q


def _tpu_budget():
    """Per-generation (max raw input block bytes, VMEM ceiling, min grid steps)."""
    kind = ""
    try:
        kind = jax.devices()[0].device_kind.lower()
    except Exception:
        pass
    # v5e / v6e: single TensorCore, 128 MiB VMEM -> one big block per step.
    # v7x (2 TCs, 64 MiB/TC) and unknown chips: keep >= 2 parallel steps,
    # smaller blocks, tighter VMEM ceiling.
    single_tc = any(t in kind for t in ("v5 lite", "v5e", "v5litepod", "v6 lite", "v6e"))
    vmem_cap = None
    try:
        vmem_cap = int(getattr(pltpu.get_tpu_info(), "vmem_capacity_bytes"))
    except Exception:
        vmem_cap = None
    if vmem_cap is None or vmem_cap <= 0:
        vmem_cap = (128 if single_tc else 64) * 2**20
    if single_tc:
        max_block_bytes = 16 * 2**20
        vmem_ceiling = min(100 * 2**20, vmem_cap - 16 * 2**20)
        min_steps = 1
    else:
        max_block_bytes = 6 * 2**20
        vmem_ceiling = min(48 * 2**20, vmem_cap - 12 * 2**20)
        min_steps = 2
    vmem_ceiling = max(vmem_ceiling, 16 * 2**20)
    return max_block_bytes, vmem_ceiling, min_steps


def _pick_bt(batch, bytes_per_image, max_block_bytes, min_steps):
    """Largest batch tile dividing B that fits the block budget and leaves at
    least `min_steps` grid steps (when the batch allows it)."""
    best = 1
    for d in range(1, batch + 1):
        if batch % d:
            continue
        if batch // d < min(min_steps, batch):
            continue
        if d * bytes_per_image > max_block_bytes:
            continue
        best = d
    return best


def cbam_pallas(x, w1, w2, wk):
    """x: (B, C, H, W); w1: (Cr, C); w2: (C, Cr); wk: (1, 2, K, K)."""
    B, C, H, W = x.shape
    Cr = w1.shape[0]
    HW = H * W

    x3 = x.reshape(B, C, HW)                                  # lane-dense layout
    conv_mat = _spatial_conv_matrix(wk, H, W).astype(jnp.bfloat16)  # (2*HW, HW) bf16
    w1t = jnp.asarray(w1, jnp.float32).T                      # (C, Cr)
    w2t = jnp.asarray(w2, jnp.float32).T                      # (Cr, C)

    max_block_bytes, vmem_ceiling, min_steps = _tpu_budget()
    bt = _pick_bt(B, C * HW * x.dtype.itemsize, max_block_bytes, min_steps)
    steps = B // bt

    # VMEM budget: double-buffered in/out blocks, ~3 f32-sized temps (x, xc,
    # out pre-cast), grid-invariant operands counted twice (fetched once, but
    # default pipelining still reserves two buffers for each), plus headroom.
    in_blk = bt * C * HW * x.dtype.itemsize
    f32_blk = bt * C * HW * 4
    const_bytes = 2 * (conv_mat.size * 2 + (w1t.size + w2t.size) * 4)
    vmem_need = 4 * in_blk + 3 * f32_blk + const_bytes + (2 << 20)
    vmem_limit = int(min(max(vmem_need, 16 * 2**20), vmem_ceiling))

    # Advisory cost estimate for XLA's scheduler.
    flops_per_image = (2 * (2 * HW) * HW            # spatial conv matmul
                       + 2 * 2 * (2 * C * Cr)       # channel MLP on [max ; avg]
                       + 10 * C * HW)               # pools + broadcast multiplies
    cost = pl.CostEstimate(
        flops=int(B * flops_per_image),
        transcendentals=int(B * (C + HW)),          # sigmoids
        bytes_accessed=int(2 * x.size * x.dtype.itemsize
                           + conv_mat.size * 2 + (w1t.size + w2t.size) * 4))

    out = pl.pallas_call(
        _cbam_kernel,
        out_shape=jax.ShapeDtypeStruct((B, C, HW), x.dtype),
        grid=(steps,),
        in_specs=[
            pl.BlockSpec((bt, C, HW), lambda b: (b, 0, 0)),
            pl.BlockSpec((C, Cr), lambda b: (0, 0)),
            pl.BlockSpec((Cr, C), lambda b: (0, 0)),
            pl.BlockSpec((2 * HW, HW), lambda b: (0, 0)),
        ],
        out_specs=pl.BlockSpec((bt, C, HW), lambda b: (b, 0, 0)),
        compiler_params=pltpu.CompilerParams(
            dimension_semantics=("parallel",),
            vmem_limit_bytes=vmem_limit),
        cost_estimate=cost,
    )(x3, w1t, w2t, conv_mat)
    return out.reshape(B, C, H, W)


def cbam_ref(x, w1, w2, wk):
    """Pure-JAX reference matching the PyTorch forward exactly (no ReLU in the
    MLP, per the reference module)."""
    hi = lax.Precision.HIGHEST
    maxp = jnp.max(x, axis=(2, 3))                  # (B, C)
    avgp = jnp.mean(x, axis=(2, 3))                 # (B, C)

    def mlp(p):                                     # two 1x1 convs, no bias, no relu
        return jnp.dot(jnp.dot(p, w1.T, precision=hi), w2.T, precision=hi)

    ch = jax.nn.sigmoid(mlp(maxp) + mlp(avgp))[:, :, None, None]
    xc = ch * x
    mx = jnp.max(xc, axis=1, keepdims=True)
    av = jnp.mean(xc, axis=1, keepdims=True)
    a = jnp.concatenate([mx, av], axis=1)           # (B, 2, H, W)
    conv = lax.conv_general_dilated(
        a, wk, window_strides=(1, 1), padding="SAME",
        dimension_numbers=("NCHW", "OIHW", "NCHW"), precision=hi)
    sp = jax.nn.sigmoid(conv)
    return sp * xc


if __name__ == "__main__":
    B, C, H, W = 2, 32, 16, 16
    reduction, K = 4, 7
    Cr = C // reduction

    key = jax.random.PRNGKey(0)
    kx, k1, k2, k3 = jax.random.split(key, 4)
    x = jax.random.normal(kx, (B, C, H, W), jnp.float32)
    w1 = 0.1 * jax.random.normal(k1, (Cr, C), jnp.float32)       # Conv2d(C, Cr, 1).weight[:, :, 0, 0]
    w2 = 0.1 * jax.random.normal(k2, (C, Cr), jnp.float32)       # Conv2d(Cr, C, 1).weight[:, :, 0, 0]
    wk = 0.1 * jax.random.normal(k3, (1, 2, K, K), jnp.float32)  # Conv2d(2, 1, 7).weight

    out = jax.block_until_ready(cbam_pallas(x, w1, w2, wk))
    ref = jax.block_until_ready(cbam_ref(x, w1, w2, wk))

    # Tolerance absorbs (a) the f32-via-bf16 MXU passes for the f32 matmuls and
    # (b) the bf16-input spatial-conv matmul (f32 accumulate), which together
    # contribute <~1e-2 abs error at these magnitudes; genuine structural or
    # indexing bugs produce errors >= 5e-2.
    if not jnp.allclose(out, ref, atol=2e-2, rtol=2e-2):
        err = float(jnp.max(jnp.abs(out - ref)))
        raise AssertionError(f"CBAM kernel mismatch: max abs err = {err}")
    print("KERNEL_OK")
</pallas_src>

<mosaic_0001>
module attributes {stable_mosaic.version = 11 : i64} {
  func.func @_cbam_kernel(%arg0: i32, %arg1: memref<1x32x256xf32, #tpu.memory_space<vmem>>, %arg2: memref<32x8xf32, #tpu.memory_space<vmem>>, %arg3: memref<8x32xf32, #tpu.memory_space<vmem>>, %arg4: memref<512x256xbf16, #tpu.memory_space<vmem>>, %arg5: memref<1x32x256xf32, #tpu.memory_space<vmem>>) attributes {dimension_semantics = [#tpu.dimension_semantics<parallel>], iteration_bounds = array<i64: 2>, scalar_prefetch = 0 : i64, scratch_operands = 0 : i64, tpu.core_type = #tpu.core_type<tc>, window_params = [{transform_indices = @transform_0, window_bounds = array<i64: 1, 32, 256>}, {pipeline_mode = #tpu.pipeline_mode<synchronous>, transform_indices = @transform_1, window_bounds = array<i64: 32, 8>}, {pipeline_mode = #tpu.pipeline_mode<synchronous>, transform_indices = @transform_2, window_bounds = array<i64: 8, 32>}, {pipeline_mode = #tpu.pipeline_mode<synchronous>, transform_indices = @transform_3, window_bounds = array<i64: 512, 256>}, {transform_indices = @transform_4, window_bounds = array<i64: 1, 32, 256>}]} {
    %c0 = arith.constant 0 : index
    %c0_0 = arith.constant 0 : index
    %c0_1 = arith.constant 0 : index
    %0 = vector.load %arg1[%c0, %c0_0, %c0_1] : memref<1x32x256xf32, #tpu.memory_space<vmem>>, vector<1x32x256xf32>
    %cst = arith.constant dense<0xFF800000> : vector<1x32xf32>
    %1 = vector.multi_reduction <maximumf>, %0, %cst [2] : vector<1x32x256xf32> to vector<1x32xf32>
    %cst_2 = arith.constant dense<0.000000e+00> : vector<1x32xf32>
    %2 = vector.multi_reduction <add>, %0, %cst_2 [2] : vector<1x32x256xf32> to vector<1x32xf32>
    %cst_3 = arith.constant 3.906250e-03 : f32
    %3 = vector.broadcast %cst_3 : f32 to vector<1x32xf32>
    %4 = arith.mulf %2, %3 : vector<1x32xf32>
    %5 = tpu.concatenate %1, %4 in 0 : vector<1x32xf32>, vector<1x32xf32> -> vector<2x32xf32>
    %c0_4 = arith.constant 0 : index
    %c0_5 = arith.constant 0 : index
    %6 = vector.load %arg2[%c0_4, %c0_5] : memref<32x8xf32, #tpu.memory_space<vmem>>, vector<32x8xf32>
    %cst_6 = arith.constant dense<0.000000e+00> : vector<2x8xf32>
    %7 = tpu.matmul %5, %6, %cst_6 {dimension_numbers = #tpu.dot_dimension_numbers<[1], [0], [0], [1], [0, 0, 1, 1], [], []>} : vector<2x32xf32>, vector<32x8xf32>, vector<2x8xf32> -> vector<2x8xf32>
    %c0_7 = arith.constant 0 : index
    %c0_8 = arith.constant 0 : index
    %8 = vector.load %arg3[%c0_7, %c0_8] : memref<8x32xf32, #tpu.memory_space<vmem>>, vector<8x32xf32>
    %cst_9 = arith.constant dense<0.000000e+00> : vector<2x32xf32>
    %9 = tpu.matmul %7, %8, %cst_9 {dimension_numbers = #tpu.dot_dimension_numbers<[1], [0], [0], [1], [0, 0, 1, 1], [], []>} : vector<2x8xf32>, vector<8x32xf32>, vector<2x32xf32> -> vector<2x32xf32>
    %10 = vector.extract_strided_slice %9 {offsets = [0, 0], sizes = [1, 32], strides = [1, 1]} : vector<2x32xf32> to vector<1x32xf32>
    %11 = vector.extract_strided_slice %9 {offsets = [1, 0], sizes = [1, 32], strides = [1, 1]} : vector<2x32xf32> to vector<1x32xf32>
    %12 = arith.addf %10, %11 : vector<1x32xf32>
    %13 = arith.negf %12 : vector<1x32xf32>
    %14 = math.exp %13 : vector<1x32xf32>
    %cst_10 = arith.constant 1.000000e+00 : f32
    %15 = vector.broadcast %cst_10 : f32 to vector<1x32xf32>
    %16 = arith.addf %15, %14 : vector<1x32xf32>
    %17 = arith.divf %15, %16 : vector<1x32xf32>
    %18 = vector.shape_cast %17 : vector<1x32xf32> to vector<1x32x1xf32>
    %19 = vector.broadcast %18 : vector<1x32x1xf32> to vector<1x32x256xf32>
    %20 = arith.mulf %0, %19 : vector<1x32x256xf32>
    %cst_11 = arith.constant dense<0xFF800000> : vector<1x256xf32>
    %21 = vector.multi_reduction <maximumf>, %20, %cst_11 [1] : vector<1x32x256xf32> to vector<1x256xf32>
    %cst_12 = arith.constant dense<0.000000e+00> : vector<1x256xf32>
    %22 = vector.multi_reduction <add>, %20, %cst_12 [1] : vector<1x32x256xf32> to vector<1x256xf32>
    %cst_13 = arith.constant 3.125000e-02 : f32
    %23 = vector.broadcast %cst_13 : f32 to vector<1x256xf32>
    %24 = arith.mulf %22, %23 : vector<1x256xf32>
    %25 = tpu.concatenate %21, %24 in 1 : vector<1x256xf32>, vector<1x256xf32> -> vector<1x512xf32>
    %26 = arith.truncf %25 : vector<1x512xf32> to vector<1x512xbf16>
    %c0_14 = arith.constant 0 : index
    %c0_15 = arith.constant 0 : index
    %27 = vector.load %arg4[%c0_14, %c0_15] : memref<512x256xbf16, #tpu.memory_space<vmem>>, vector<512x256xbf16>
    %cst_16 = arith.constant dense<0.000000e+00> : vector<1x256xf32>
    %28 = tpu.matmul %26, %27, %cst_16 {dimension_numbers = #tpu.dot_dimension_numbers<[1], [0], [0], [1], [0, 0, 1, 1], [], []>} : vector<1x512xbf16>, vector<512x256xbf16>, vector<1x256xf32> -> vector<1x256xf32>
    %29 = arith.negf %28 : vector<1x256xf32>
    %30 = math.exp %29 : vector<1x256xf32>
    %cst_17 = arith.constant 1.000000e+00 : f32
    %31 = vector.broadcast %cst_17 : f32 to vector<1x256xf32>
    %32 = arith.addf %31, %30 : vector<1x256xf32>
    %33 = arith.divf %31, %32 : vector<1x256xf32>
    %34 = vector.shape_cast %33 : vector<1x256xf32> to vector<1x1x256xf32>
    %35 = vector.broadcast %34 : vector<1x1x256xf32> to vector<1x32x256xf32>
    %36 = arith.mulf %20, %35 : vector<1x32x256xf32>
    %c0_18 = arith.constant 0 : index
    %c0_19 = arith.constant 0 : index
    %c0_20 = arith.constant 0 : index
    %37 = vector.load %arg5[%c0_18, %c0_19, %c0_20] : memref<1x32x256xf32, #tpu.memory_space<vmem>>, vector<1x32x256xf32>
    tpu.vector_store %arg5[%c0_18, %c0_19, %c0_20], %36 {strides = array<i32>} : memref<1x32x256xf32, #tpu.memory_space<vmem>>, vector<1x32x256xf32>,
    return
  }
  func.func @transform_0(%arg0: i32) -> (i32, i32, i32) {
    %c0_i32 = arith.constant 0 : i32
    %c0_i32_0 = arith.constant 0 : i32
    %c0_i32_1 = arith.constant 0 : i32
    return %arg0, %c0_i32, %c0_i32_0 : i32, i32, i32
  }
  func.func @transform_1(%arg0: i32) -> (i32, i32) {
    %c0_i32 = arith.constant 0 : i32
    %c0_i32_0 = arith.constant 0 : i32
    %c0_i32_1 = arith.constant 0 : i32
    return %c0_i32, %c0_i32_0 : i32, i32
  }
  func.func @transform_2(%arg0: i32) -> (i32, i32) {
    %c0_i32 = arith.constant 0 : i32
    %c0_i32_0 = arith.constant 0 : i32
    %c0_i32_1 = arith.constant 0 : i32
    return %c0_i32, %c0_i32_0 : i32, i32
  }
  func.func @transform_3(%arg0: i32) -> (i32, i32) {
    %c0_i32 = arith.constant 0 : i32
    %c0_i32_0 = arith.constant 0 : i32
    %c0_i32_1 = arith.constant 0 : i32
    return %c0_i32, %c0_i32_0 : i32, i32
  }
  func.func @transform_4(%arg0: i32) -> (i32, i32, i32) {
    %c0_i32 = arith.constant 0 : i32
    %c0_i32_0 = arith.constant 0 : i32
    %c0_i32_1 = arith.constant 0 : i32
    return %arg0, %c0_i32, %c0_i32_0 : i32, i32, i32
  }
}

</mosaic_0001>

<llo_original>
// kernel: tpu_custom_call.1
$region0: #{tpu_custom_call.1}
  #allocation0 [shape = 'u32[]', space=smem, size = 0x4, offset = 0x4, fixed_abs, tag = 'smem constant byte address 0x4 - core index']
  #allocation1 [shape = 'u32[144,128]{1,0:T(1,128)}', space=vmem, size = 0x12000, scoped, tag = 'internal scratch']
  %s0 = inlined_call_operand.hbm [shape: f32[2,32,256], index: 0, kind: input, shape index: {}]
  %s1 = inlined_call_operand.vmem [shape: f32[32,8], index: 1, kind: input, shape index: {}]
  %s2 = inlined_call_operand.vmem [shape: f32[8,32], index: 2, kind: input, shape index: {}]
  %s3 = inlined_call_operand.hbm [shape: bf16[512,256], index: 3, kind: input, shape index: {}]
  %s4 = inlined_call_operand.hbm [shape: f32[2,32,256], index: 4, kind: output, shape index: {}]
  %s5 = sld [smem:[#allocation0]]
  $region57: #{tpu_custom_call.1} parent=0
    _
  %s7 = ssub.s32 1, %s5
  %s8 = scalar_select 0, %s7, %s5
  $region1: #{tpu_custom_call.1} parent=0
    #allocation2 [shape = 'u8[65536]{0}', space=vmem, size = 0x10000, scoped, tag = 'input window, operand 0']
    #allocation3 [shape = 's32[2]{0}', space=sflag, size = 0x8, scoped, tag = 'scoped memory for tpu_custom_call.1']
    #allocation4 [shape = 's32[2]{0}', space=sflag, size = 0x8, scoped, tag = 'scoped memory for tpu_custom_call.1']
    #allocation5 [shape = 'u8[262144]{0}', space=vmem, size = 0x40000, scoped, tag = 'input window, operand 3, single buffered']
    #allocation6 [shape = 's32[1]{0}', space=sflag, size = 0x4, scoped, tag = 'scoped memory for tpu_custom_call.1']
    #allocation7 [shape = 'u8[65536]{0}', space=vmem, size = 0x10000, scoped, tag = 'output window, operand 0']
    %9 = vsyncpa [#allocation3], 0
    %s10 = scalar_lea.sflag [#allocation3], 1
    %11 = vsyncpa %s10, 0
    %12 = vsyncpa [#allocation6], 0
    %13 = vsyncpa [#allocation4], 0
    %s14 = scalar_lea.sflag [#allocation4], 1
    %15 = vsyncpa %s14, 0
    loop: start=0, step=1, limit=4
    $region2: #{tpu_custom_call.1} parent=1 // loop_pre_header
      _
    $region3: #{tpu_custom_call.1} parent=1 // loop_header
      %s17 = sphi 0, %s21
      %p18 = scmp.ge.s32.totalorder %s17, 4
      %s27 = sphi 0, %s29
      %s30 = sphi 0, %s27
      %s31 = sphi 0, %s30
      %s47 = sphi 0, %s31
      %s51 = sphi 0, %s51
      %s53 = sphi 0, %s51
      %s54 = sphi 0, %s53
      %s68 = sphi 0, %s54
      %s72 = sphi 0, %s72
      %s74 = sphi 0, %s72
      %s75 = sphi 0, %s74
      %s89 = sphi 0, %s75
      %s93 = sphi 0, %s93
      %s95 = sphi 0, %s93
      %s96 = sphi 0, %s95
      %s110 = sphi 0, %s96
      %s116 = sphi 0, %s118
      %s119 = sphi 0, %s116
      %s120 = sphi 0, %s119
      %s136 = sphi 0, %s120
    $region4: #{tpu_custom_call.1} parent=1 // loop_header_branch
      %20 = sbr.rel (%p18) target = $region8
    $region5: #{tpu_custom_call.1} parent=1 // loop_body
      %s22 = ssub.s32 %s17, 1
      %s23 = ssub.s32 %s17, 2
      %s24 = sadd.s32 %s17, 1
      %s25 = ssub.s32 %s17, %s24
      %p26 = scmp.eq.s32.totalorder %s25, 0
      %s28 = sadd.s32 %s27, 1
      %s29 = scalar_select %p26, %s27, %s28
      %p32 = pneg %p26
      %p33 = scmp.eq.s32.totalorder %s17, 1
      %p34 = por %p32, %p33
      %p35 = scmp.ne.s32.totalorder %s27, %s30
      %p36 = scmp.eq.s32.totalorder %s17, 0
      %p37 = por %p35, %p36
      %p38 = scmp.ne.s32.totalorder %s27, %s30
      %p39 = scmp.eq.s32.totalorder %s22, 1
      %p40 = por %p38, %p39
      %p41 = scmp.ne.s32.totalorder %s30, %s31
      %p42 = scmp.eq.s32.totalorder %s22, 0
      %p43 = por %p41, %p42
      %p44 = scmp.ne.s32.totalorder %s30, %s31
      %p45 = scmp.eq.s32.totalorder %s23, 1
      %p46 = por %p44, %p45
      %p48 = scmp.ne.s32.totalorder %s31, %s47
      %p49 = scmp.eq.s32.totalorder %s23, 0
      %p50 = por %p48, %p49
      %s52 = sadd.s32 %s51, 1
      %p55 = scmp.eq.s32.totalorder %s17, 1
      %p56 = scmp.ne.s32.totalorder %s51, %s53
      %p57 = scmp.eq.s32.totalorder %s17, 0
      %p58 = por %p56, %p57
      %p59 = scmp.ne.s32.totalorder %s51, %s53
      %p60 = scmp.eq.s32.totalorder %s22, 1
      %p61 = por %p59, %p60
      %p62 = scmp.ne.s32.totalorder %s53, %s54
      %p63 = scmp.eq.s32.totalorder %s22, 0
      %p64 = por %p62, %p63
      %p65 = scmp.ne.s32.totalorder %s53, %s54
      %p66 = scmp.eq.s32.totalorder %s23, 1
      %p67 = por %p65, %p66
      %p69 = scmp.ne.s32.totalorder %s54, %s68
      %p70 = scmp.eq.s32.totalorder %s23, 0
      %p71 = por %p69, %p70
      %s73 = sadd.s32 %s72, 1
      %p76 = scmp.eq.s32.totalorder %s17, 1
      %p77 = scmp.ne.s32.totalorder %s72, %s74
      %p78 = scmp.eq.s32.totalorder %s17, 0
      %p79 = por %p77, %p78
      %p80 = scmp.ne.s32.totalorder %s72, %s74
      %p81 = scmp.eq.s32.totalorder %s22, 1
      %p82 = por %p80, %p81
      %p83 = scmp.ne.s32.totalorder %s74, %s75
      %p84 = scmp.eq.s32.totalorder %s22, 0
      %p85 = por %p83, %p84
      %p86 = scmp.ne.s32.totalorder %s74, %s75
      %p87 = scmp.eq.s32.totalorder %s23, 1
      %p88 = por %p86, %p87
      %p90 = scmp.ne.s32.totalorder %s75, %s89
      %p91 = scmp.eq.s32.totalorder %s23, 0
      %p92 = por %p90, %p91
      %s94 = sadd.s32 %s93, 1
      %p97 = scmp.eq.s32.totalorder %s17, 1
      %p98 = scmp.ne.s32.totalorder %s93, %s95
      %p99 = scmp.eq.s32.totalorder %s17, 0
      %p100 = por %p98, %p99
      %p101 = scmp.ne.s32.totalorder %s93, %s95
      %p102 = scmp.eq.s32.totalorder %s22, 1
      %p103 = por %p101, %p102
      %p104 = scmp.ne.s32.totalorder %s95, %s96
      %p105 = scmp.eq.s32.totalorder %s22, 0
      %p106 = por %p104, %p105
      %p107 = scmp.ne.s32.totalorder %s95, %s96
      %p108 = scmp.eq.s32.totalorder %s23, 1
      %p109 = por %p107, %p108
      %p111 = scmp.ne.s32.totalorder %s96, %s110
      %p112 = scmp.eq.s32.totalorder %s23, 0
      %p113 = por %p111, %p112
      %s114 = ssub.s32 %s17, %s24
      %p115 = scmp.eq.s32.totalorder %s114, 0
      %s117 = sadd.s32 %s116, 1
      %s118 = scalar_select %p115, %s116, %s117
      %p121 = pneg %p115
      %p122 = scmp.eq.s32.totalorder %s17, 1
      %p123 = por %p121, %p122
      %p124 = scmp.ne.s32.totalorder %s116, %s119
      %p125 = scmp.eq.s32.totalorder %s17, 0
      %p126 = por %p124, %p125
      %p127 = scmp.ne.s32.totalorder %s116, %s119
      %p128 = scmp.eq.s32.totalorder %s22, 1
      %p129 = por %p127, %p128
      %p130 = scmp.ne.s32.totalorder %s119, %s120
      %p131 = scmp.eq.s32.totalorder %s22, 0
      %p132 = por %p130, %p131
      %p133 = scmp.ne.s32.totalorder %s119, %s120
      %p134 = scmp.eq.s32.totalorder %s23, 1
      %p135 = por %p133, %p134
      %p137 = scmp.ne.s32.totalorder %s120, %s136
      %p138 = scmp.eq.s32.totalorder %s23, 0
      %p139 = por %p137, %p138
      %p140 = scmp.le.s32.totalorder 1, %s17
      %p141 = scmp.lt.s32.totalorder %s17, 3
      %p142 = pnand %p140, %p141
      %p143 = pneg %p142
      // Predicated region
      $region9: #{tpu_custom_call.1} parent=5 // pred_check
        _
      $region10: #{tpu_custom_call.1} parent=5 // pred_check_branch
        %145 = sbr.rel (%p142) target = $region12
      $region11: #{tpu_custom_call.1} parent=5 // pred_region
        %s146 = ssub.s32 %s17, 1
        // Predicated region
        $region13: #{tpu_custom_call.1} parent=11 // pred_check
          %p147 = pneg %p64
        $region14: #{tpu_custom_call.1} parent=11 // pred_check_branch
          %149 = sbr.rel (%p147) target = $region16
        $region15: #{tpu_custom_call.1} parent=11 // pred_region
          _
        $region16: #{tpu_custom_call.1} parent=11 // pred_fallthru
          _
        // Predicated region
        $region17: #{tpu_custom_call.1} parent=11 // pred_check
          %p150 = pneg %p85
        $region18: #{tpu_custom_call.1} parent=11 // pred_check_branch
          %152 = sbr.rel (%p150) target = $region20
        $region19: #{tpu_custom_call.1} parent=11 // pred_region
          _
        $region20: #{tpu_custom_call.1} parent=11 // pred_fallthru
          _
        // Predicated region
        $region21: #{tpu_custom_call.1} parent=11 // pred_check
          %p153 = pneg %p106
        $region22: #{tpu_custom_call.1} parent=11 // pred_check_branch
          %155 = sbr.rel (%p153) target = $region24
        $region23: #{tpu_custom_call.1} parent=11 // pred_region
          %s157 = ssub.s32 8192, 8192
          %158 = vsyncadd [#allocation6], %s157
          %s159 = sshll.u32 [#allocation5], 4
          %s160 = int_to_ptr.vmem [resolvable:$true] %s159
          %165 = dma.hbm_to_vmem [thread:$0]  %s3, 8192, %s160, [#allocation6], 128, 128, 8
        $region24: #{tpu_custom_call.1} parent=11 // pred_fallthru
          _
      $region12: #{tpu_custom_call.1} parent=5 // pred_fallthru
        _
      %p166 = scmp.lt.s32.totalorder %s17, 2
      // Predicated region
      $region25: #{tpu_custom_call.1} parent=5 // pred_check
        %p167 = pneg %p166
      $region26: #{tpu_custom_call.1} parent=5 // pred_check_branch
        %169 = sbr.rel (%p167) target = $region28
      $region27: #{tpu_custom_call.1} parent=5 // pred_region
        // Predicated region
        $region29: #{tpu_custom_call.1} parent=27 // pred_check
          %p170 = pneg %p37
        $region30: #{tpu_custom_call.1} parent=27 // pred_check_branch
          %172 = sbr.rel (%p170) target = $region32
        $region31: #{tpu_custom_call.1} parent=27 // pred_region
          %s173 = sand.u32 %s27, 1
          %s174 = scalar_lea.sflag [#allocation3], %s173
          %s175 = sand.u32 %s27, 1
          %s176 = smul.addr %s175, 64
          %s177 = scalar_lea.vmem [#allocation2], %s176
          %s179 = ssub.s32 1024, 1024
          %180 = vsyncadd %s174, %s179
          %s181 = smul.addr %s17, 8
          %s182 = smul.addr %s181, 128
          %s183 = scalar_lea.hbm %s0, %s182
          %s184 = sshll.u32 %s177, 4
          %s185 = int_to_ptr.vmem [resolvable:$true] %s184
          %190 = dma.hbm_to_vmem [thread:$0]  %s183, 1024, %s185, %s174, 256, 256, 16
        $region32: #{tpu_custom_call.1} parent=27 // pred_fallthru
          _
      $region28: #{tpu_custom_call.1} parent=5 // pred_fallthru
        _
      %p191 = scmp.le.s32.totalorder 1, %s17
      %p192 = scmp.lt.s32.totalorder %s17, 3
      %p193 = pnand %p191, %p192
      %p194 = pneg %p193
      // Predicated region
      $region33: #{tpu_custom_call.1} parent=5 // pred_check
        _
      $region34: #{tpu_custom_call.1} parent=5 // pred_check_branch
        %196 = sbr.rel (%p193) target = $region36
      $region35: #{tpu_custom_call.1} parent=5 // pred_region
        %s197 = ssub.s32 %s17, 1
        %s198 = sand.u32 %s30, 1
        %s199 = scalar_lea.sflag [#allocation3], %s198
        %s200 = sand.u32 %s30, 1
        %s201 = smul.addr %s200, 64
        %s202 = scalar_lea.vmem [#allocation2], %s201
        // Predicated region
        $region37: #{tpu_custom_call.1} parent=35 // pred_check
          %p203 = pneg %p43
        $region38: #{tpu_custom_call.1} parent=35 // pred_check_branch
          %205 = sbr.rel (%p203) target = $region40
        $region39: #{tpu_custom_call.1} parent=35 // pred_region
          %206 = dma.done %s199, 1024
        $region40: #{tpu_custom_call.1} parent=35 // pred_fallthru
          _
        // Predicated region
        $region41: #{tpu_custom_call.1} parent=35 // pred_check
          %p207 = pneg %p106
        $region42: #{tpu_custom_call.1} parent=35 // pred_check_branch
          %209 = sbr.rel (%p207) target = $region44
        $region43: #{tpu_custom_call.1} parent=35 // pred_region
          %210 = dma.done [#allocation6], 8192
        $region44: #{tpu_custom_call.1} parent=35 // pred_fallthru
          _
        %s211 = sand.u32 %s30, 1
        %s212 = scalar_lea.sflag [#allocation3], %s211
        %s213 = sand.u32 %s30, 1
        %s214 = smul.addr %s213, 64
        %s215 = scalar_lea.vmem [#allocation2], %s214
        %p216 = pneg %p43
        %p217 = pneg %p40
        %p218 = pneg %p64
        %p219 = pneg %p61
        %p220 = pneg %p85
        %p221 = pneg %p82
        %p222 = pneg %p106
        %p223 = pneg %p103
        %p224 = pneg %p132
        %p225 = pneg %p129
        %s226 = sand.u32 %s119, 1
        %s227 = scalar_lea.sflag [#allocation4], %s226
        %s228 = sand.u32 %s119, 1
        %s229 = smul.addr %s228, 64
        %s230 = scalar_lea.vmem [#allocation7], %s229
        %v231 = vld [vmem:[%s202] sm:$0xff]
        %v232 = vld [vmem:[%s202 + $0x8] sm:$0xff]
        %v233 = vld [vmem:[%s202 + $0x10] sm:$0xff]
        %v234 = vld [vmem:[%s202 + $0x18] sm:$0xff]
        %v235 = vld [vmem:[%s202 + $0x20] sm:$0xff]
        %v236 = vld [vmem:[%s202 + $0x28] sm:$0xff]
        %v237 = vld [vmem:[%s202 + $0x30] sm:$0xff]
        %v238 = vld [vmem:[%s202 + $0x38] sm:$0xff]
        %v239 = vmax.f32 %v231, %v232
        %240 = vmax.xlane.f32.xlu0 %v239
        %v241 = vpop.xlane.xlu0 %240
        %v242 = vmax.f32 %v233, %v234
        %243 = vmax.xlane.f32.xlu0 %v242
        %v244 = vpop.xlane.xlu0 %243
        %v245 = vmax.f32 %v235, %v236
        %246 = vmax.xlane.f32.xlu0 %v245
        %v247 = vpop.xlane.xlu0 %246
        %v248 = vmax.f32 %v237, %v238
        %249 = vmax.xlane.f32.xlu0 %v248
        %v250 = vpop.xlane.xlu0 %249
        %v251 = vadd.f32 %v231, %v232
        %252 = vadd.xlane.f32.xlu0 %v251
        %v253 = vpop.xlane.xlu0 %252
        %v254 = vadd.f32 %v233, %v234
        %255 = vadd.xlane.f32.xlu0 %v254
        %v256 = vpop.xlane.xlu0 %255
        %v257 = vadd.f32 %v235, %v236
        %258 = vadd.xlane.f32.xlu0 %v257
        %v259 = vpop.xlane.xlu0 %258
        %v260 = vadd.f32 %v237, %v238
        %261 = vadd.xlane.f32.xlu0 %v260
        %v262 = vpop.xlane.xlu0 %261
        %v263 = vmul.f32 %v253, 0.00390625
        %v264 = vmul.f32 %v256, 0.00390625
        %v265 = vmul.f32 %v259, 0.00390625
        %v266 = vmul.f32 %v262, 0.00390625
        %v271 = vlaneseq
        %v272 = vand.u32 %v271, 127
        %v273 = vlaneseq
        %v274 = vshrl.u32 %v273, 7
        %v275 = vsub.s32 %v272, %v274
        %v276 = vrot.slane %v241, %v275
        %v277 = vadd.s32 %v272, 4294967288
        %v278 = vlaneseq
        %v279 = vshrl.u32 %v278, 7
        %v280 = vsub.s32 %v277, %v279
        %v281 = vrot.slane %v244, %v280
        %vm282 = vcmask 130112
        %v283 = vsel %vm282, %v281, %v276
        %v284 = vadd.s32 %v272, 4294967280
        %v285 = vlaneseq
        %v286 = vshrl.u32 %v285, 7
        %v287 = vsub.s32 %v284, %v286
        %v288 = vrot.slane %v247, %v287
        %vm289 = vcmask 195712
        %v290 = vsel %vm289, %v288, %v283
        %v291 = vadd.s32 %v272, 4294967272
        %v292 = vlaneseq
        %v293 = vshrl.u32 %v292, 7
        %v294 = vsub.s32 %v291, %v293
        %v295 = vrot.slane %v250, %v294
        %vm296 = vcmask 261312
        %v297 = vsel %vm296, %v295, %v290
        %v303 = vlaneseq
        %v304 = vshrl.u32 %v303, 7
        %v305 = vsub.s32 %v272, %v304
        %v306 = vrot.slane %v263, %v305
        %v307 = vlaneseq
        %v308 = vshrl.u32 %v307, 7
        %v309 = vsub.s32 %v277, %v308
        %v310 = vrot.slane %v264, %v309
        %v311 = vsel %vm282, %v310, %v306
        %v312 = vlaneseq
        %v313 = vshrl.u32 %v312, 7
        %v314 = vsub.s32 %v284, %v313
        %v315 = vrot.slane %v265, %v314
        %v316 = vsel %vm289, %v315, %v311
        %v317 = vlaneseq
        %v318 = vshrl.u32 %v317, 7
        %v319 = vsub.s32 %v291, %v318
        %v320 = vrot.slane %v266, %v319
        %v321 = vsel %vm296, %v320, %v316
        %vm323 = vcmask 1040384
        %v324 = vsel %vm323, %v297, %v321
        %v325 = vld [vmem:[%s1] sm:$0xff]
        %v326 = vld [vmem:[%s1 + $0x8] sm:$0xff]
        %v327 = vld [vmem:[%s1 + $0x10] sm:$0xff]
        %v328 = vld [vmem:[%s1 + $0x18] sm:$0xff]
        %vm329 = vcmask 261120
        %v331 = vsel %vm329, %v324, 0
        %333 = vmatprep.subr.mxu0 0.0
        %334 = vmatpush1.msra.mxu0 0.0
        %335 = vmatprep.subr.mxu0 0.0
        %336 = vmatpush1.msra.mxu0 0.0
        %337 = vmatprep.subr.mxu0 0.0
        %338 = vmatpush1.msra.mxu0 0.0
        %339 = vmatprep.subr.mxu0 0.0
        %340 = vmatpush1.msra.mxu0 0.0
        %341 = vmatprep.subr.mxu0 0.0
        %342 = vmatpush1.msra.mxu0 0.0
        %343 = vmatprep.subr.mxu0 0.0
        %344 = vmatpush1.msra.mxu0 0.0
        %345 = vmatprep.subr.mxu0 0.0
        %346 = vmatpush1.msra.mxu0 0.0
        %347 = vmatprep.subr.mxu0 0.0
        %348 = vmatpush1.msra.mxu0 0.0
        %349 = vmatprep.subr.mxu0 0.0
        %350 = vmatpush1.msra.mxu0 0.0
        %351 = vmatprep.subr.mxu0 0.0
        %352 = vmatpush1.msra.mxu0 0.0
        %353 = vmatprep.subr.mxu0 0.0
        %354 = vmatpush1.msra.mxu0 0.0
        %355 = vmatprep.subr.mxu0 0.0
        %356 = vmatpush1.msra.mxu0 0.0
        %357 = vmatprep.subr.mxu0 0.0
        %358 = vmatpush1.msra.mxu0 %v328
        %359 = vmatprep.subr.mxu0 0.0
        %360 = vmatpush1.msra.mxu0 %v327
        %361 = vmatprep.subr.mxu0 0.0
        %362 = vmatpush1.msra.mxu0 %v326
        %363 = vmatprep.subr.mxu0 0.0
        %364 = vmatpush1.msra.mxu0 %v325
        %365 = vmatprep.subr.mxu0 0.0
        %366 = vmatpush2.msra.mxu0 0.0
        %367 = vmatprep.subr.mxu0 0.0
        %368 = vmatpush2.msra.mxu0 0.0
        %369 = vmatprep.subr.mxu0 0.0
        %370 = vmatpush2.msra.mxu0 0.0
        %371 = vmatprep.subr.mxu0 0.0
        %372 = vmatpush2.msra.mxu0 0.0
        %373 = vmatprep.subr.mxu0 0.0
        %374 = vmatpush2.msra.mxu0 0.0
        %375 = vmatprep.subr.mxu0 0.0
        %376 = vmatpush2.msra.mxu0 0.0
        %377 = vmatprep.subr.mxu0 0.0
        %378 = vmatpush2.msra.mxu0 0.0
        %379 = vmatprep.subr.mxu0 0.0
        %380 = vmatpush2.msra.mxu0 0.0
        %381 = vmatprep.subr.mxu0 0.0
        %382 = vmatpush2.msra.mxu0 0.0
        %383 = vmatprep.subr.mxu0 0.0
        %384 = vmatpush2.msra.mxu0 0.0
        %385 = vmatprep.subr.mxu0 0.0
        %386 = vmatpush2.msra.mxu0 0.0
        %387 = vmatprep.subr.mxu0 0.0
        %388 = vmatpush2.msra.mxu0 0.0
        %389 = vmatprep.subr.mxu0 0.0
        %390 = vmatpush2.msra.mxu0 0.0
        %391 = vmatprep.subr.mxu0 0.0
        %392 = vmatpush2.msra.mxu0 0.0
        %393 = vmatprep.subr.mxu0 0.0
        %394 = vmatpush2.msra.mxu0 0.0
        %395 = vmatprep.subr.mxu0 0.0
        %396 = vmatpush2.msra.mxu0 0.0
        %397 = vmatprep.mubr.f32.mxu0 0.0
        %398 = vmatmul.mubr.f32.gmra.mxu0 %v331
        %v399 = vpop.f32.mrf.mxu0
        %v400 = vadd.f32 0.0, %v399
        %v401 = vpop.f32.mrf.mxu0
        %402 = vdwg.mxu0
        %v403 = vld [vmem:[%s2] sm:$0xff]
        %vm404 = vcmask 64512
        %v406 = vsel %vm404, %v400, 0
        %408 = vmatprep.subr.mxu0 0.0
        %409 = vmatpush1.msra.mxu0 0.0
        %410 = vmatprep.subr.mxu0 0.0
        %411 = vmatpush1.msra.mxu0 0.0
        %412 = vmatprep.subr.mxu0 0.0
        %413 = vmatpush1.msra.mxu0 0.0
        %414 = vmatprep.subr.mxu0 0.0
        %415 = vmatpush1.msra.mxu0 0.0
        %416 = vmatprep.subr.mxu0 0.0
        %417 = vmatpush1.msra.mxu0 0.0
        %418 = vmatprep.subr.mxu0 0.0
        %419 = vmatpush1.msra.mxu0 0.0
        %420 = vmatprep.subr.mxu0 0.0
        %421 = vmatpush1.msra.mxu0 0.0
        %422 = vmatprep.subr.mxu0 0.0
        %423 = vmatpush1.msra.mxu0 0.0
        %424 = vmatprep.subr.mxu0 0.0
        %425 = vmatpush1.msra.mxu0 0.0
        %426 = vmatprep.subr.mxu0 0.0
        %427 = vmatpush1.msra.mxu0 0.0
        %428 = vmatprep.subr.mxu0 0.0
        %429 = vmatpush1.msra.mxu0 0.0
        %430 = vmatprep.subr.mxu0 0.0
        %431 = vmatpush1.msra.mxu0 0.0
        %432 = vmatprep.subr.mxu0 0.0
        %433 = vmatpush1.msra.mxu0 0.0
        %434 = vmatprep.subr.mxu0 0.0
        %435 = vmatpush1.msra.mxu0 0.0
        %436 = vmatprep.subr.mxu0 0.0
        %437 = vmatpush1.msra.mxu0 0.0
        %438 = vmatprep.subr.mxu0 0.0
        %439 = vmatpush1.msra.mxu0 %v403
        %440 = vmatprep.subr.mxu0 0.0
        %441 = vmatpush2.msra.mxu0 0.0
        %442 = vmatprep.subr.mxu0 0.0
        %443 = vmatpush2.msra.mxu0 0.0
        %444 = vmatprep.subr.mxu0 0.0
        %445 = vmatpush2.msra.mxu0 0.0
        %446 = vmatprep.subr.mxu0 0.0
        %447 = vmatpush2.msra.mxu0 0.0
        %448 = vmatprep.subr.mxu0 0.0
        %449 = vmatpush2.msra.mxu0 0.0
        %450 = vmatprep.subr.mxu0 0.0
        %451 = vmatpush2.msra.mxu0 0.0
        %452 = vmatprep.subr.mxu0 0.0
        %453 = vmatpush2.msra.mxu0 0.0
        %454 = vmatprep.subr.mxu0 0.0
        %455 = vmatpush2.msra.mxu0 0.0
        %456 = vmatprep.subr.mxu0 0.0
        %457 = vmatpush2.msra.mxu0 0.0
        %458 = vmatprep.subr.mxu0 0.0
        %459 = vmatpush2.msra.mxu0 0.0
        %460 = vmatprep.subr.mxu0 0.0
        %461 = vmatpush2.msra.mxu0 0.0
        %462 = vmatprep.subr.mxu0 0.0
        %463 = vmatpush2.msra.mxu0 0.0
        %464 = vmatprep.subr.mxu0 0.0
        %465 = vmatpush2.msra.mxu0 0.0
        %466 = vmatprep.subr.mxu0 0.0
        %467 = vmatpush2.msra.mxu0 0.0
        %468 = vmatprep.subr.mxu0 0.0
        %469 = vmatpush2.msra.mxu0 0.0
        %470 = vmatprep.subr.mxu0 0.0
        %471 = vmatpush2.msra.mxu0 0.0
        %472 = vmatprep.mubr.f32.mxu0 0.0
        %473 = vmatmul.mubr.f32.gmra.mxu0 %v406
        %v474 = vpop.f32.mrf.mxu0
        %v475 = vadd.f32 0.0, %v474
        %v476 = vpop.f32.mrf.mxu0
        %477 = vdwg.mxu0
        %v479 = vrot.slane %v475, 1
        %v481 = vadd.f32 %v475, %v479
        %v482 = vxor.u32 %v481, 2147483648
        %v483 = vmul.f32 %v482, 1.442695
        %v484 = vpow.pop %v483
        %v485 = vadd.f32 %v484, 1.0
        %v486 = vrcp.pop %v485
        %v487 = vmul.f32 1.0, %v486
        %v488 = vlaneseq
        %v489 = vshrl.u32 %v488, 7
        %v490 = vsub.s32 0, %v489
        %v491 = vrot.slane %v487, %v490
        %493 = vbcast.lane.b32.xlu0 %v491, 256
        %v494 = vpop.permute.xlu0 %493
        %s496 = sor.u32 256, 8
        %497 = vbcast.lane.b32.xlu0 %v491, %s496
        %v498 = vpop.permute.xlu0 %497
        %s500 = sor.u32 256, 16
        %501 = vbcast.lane.b32.xlu0 %v491, %s500
        %v502 = vpop.permute.xlu0 %501
        %s504 = sor.u32 256, 24
        %505 = vbcast.lane.b32.xlu0 %v491, %s504
        %v506 = vpop.permute.xlu0 %505
        %v507 = vmul.f32 %v231, %v494
        %v508 = vmul.f32 %v232, %v494
        %v509 = vmul.f32 %v233, %v498
        %v510 = vmul.f32 %v234, %v498
        %v511 = vmul.f32 %v235, %v502
        %v512 = vmul.f32 %v236, %v502
        %v513 = vmul.f32 %v237, %v506
        %v514 = vmul.f32 %v238, %v506
        %v515 = vmax.f32 %v507, %v511
        %v516 = vmax.f32 %v509, %v513
        %v517 = vmax.f32 %v515, %v516
        %v518 = vrot.slane %v517, 4
        %v519 = vmax.f32 %v517, %v518
        %v520 = vrot.slane %v519, 2
        %v521 = vmax.f32 %v519, %v520
        %v522 = vrot.slane %v521, 1
        %v523 = vmax.f32 %v521, %v522
        %v524 = vmax.f32 %v508, %v512
        %v525 = vmax.f32 %v510, %v514
        %v526 = vmax.f32 %v524, %v525
        %v527 = vrot.slane %v526, 4
        %v528 = vmax.f32 %v526, %v527
        %v529 = vrot.slane %v528, 2
        %v530 = vmax.f32 %v528, %v529
        %v531 = vrot.slane %v530, 1
        %v532 = vmax.f32 %v530, %v531
        %v533 = vadd.f32 %v507, %v509
        %v534 = vadd.f32 %v533, %v511
        %v535 = vadd.f32 %v534, %v513
        %v536 = vrot.slane %v535, 4
        %v537 = vadd.f32 %v535, %v536
        %v538 = vrot.slane %v537, 2
        %v539 = vadd.f32 %v537, %v538
        %v540 = vrot.slane %v539, 1
        %v541 = vadd.f32 %v539, %v540
        %v542 = vadd.f32 %v508, %v510
        %v543 = vadd.f32 %v542, %v512
        %v544 = vadd.f32 %v543, %v514
        %v545 = vrot.slane %v544, 4
        %v546 = vadd.f32 %v544, %v545
        %v547 = vrot.slane %v546, 2
        %v548 = vadd.f32 %v546, %v547
        %v549 = vrot.slane %v548, 1
        %v550 = vadd.f32 %v548, %v549
        %v551 = vmul.f32 %v541, 0.03125
        %v552 = vmul.f32 %v550, 0.03125
        %v553 = vpack.c.bf16 %v523, %v523
        %v554 = vpack.c.bf16 %v532, %v532
        %v555 = vpack.c.bf16 %v551, %v551
        %v556 = vpack.c.bf16 %v552, %v552
        %v557 = vld [vmem:[#allocation5] sm:$0xff]
        %v558 = vld [vmem:[#allocation5 + $0x8] sm:$0xff]
        %v559 = vld [vmem:[#allocation5 + $0x10] sm:$0xff]
        %v560 = vld [vmem:[#allocation5 + $0x18] sm:$0xff]
        %v561 = vld [vmem:[#allocation5 + $0x20] sm:$0xff]
        %v562 = vld [vmem:[#allocation5 + $0x28] sm:$0xff]
        %v563 = vld [vmem:[#allocation5 + $0x30] sm:$0xff]
        %v564 = vld [vmem:[#allocation5 + $0x38] sm:$0xff]
        %v565 = vld [vmem:[#allocation5 + $0x40] sm:$0xff]
        %v566 = vld [vmem:[#allocation5 + $0x48] sm:$0xff]
        %v567 = vld [vmem:[#allocation5 + $0x50] sm:$0xff]
        %v568 = vld [vmem:[#allocation5 + $0x58] sm:$0xff]
        %v569 = vld [vmem:[#allocation5 + $0x60] sm:$0xff]
        %v570 = vld [vmem:[#allocation5 + $0x68] sm:$0xff]
        %v571 = vld [vmem:[#allocation5 + $0x70] sm:$0xff]
        %v572 = vld [vmem:[#allocation5 + $0x78] sm:$0xff]
        %v573 = vld [vmem:[#allocation5 + $0x80] sm:$0xff]
        %v574 = vld [vmem:[#allocation5 + $0x88] sm:$0xff]
        %v575 = vld [vmem:[#allocation5 + $0x90] sm:$0xff]
        %v576 = vld [vmem:[#allocation5 + $0x98] sm:$0xff]
        %v577 = vld [vmem:[#allocation5 + $0xa0] sm:$0xff]
        %v578 = vld [vmem:[#allocation5 + $0xa8] sm:$0xff]
        %v579 = vld [vmem:[#allocation5 + $0xb0] sm:$0xff]
        %v580 = vld [vmem:[#allocation5 + $0xb8] sm:$0xff]
        %v581 = vld [vmem:[#allocation5 + $0xc0] sm:$0xff]
        %v582 = vld [vmem:[#allocation5 + $0xc8] sm:$0xff]
        %v583 = vld [vmem:[#allocation5 + $0xd0] sm:$0xff]
        %v584 = vld [vmem:[#allocation5 + $0xd8] sm:$0xff]
        %v585 = vld [vmem:[#allocation5 + $0xe0] sm:$0xff]
        %v586 = vld [vmem:[#allocation5 + $0xe8] sm:$0xff]
        %v587 = vld [vmem:[#allocation5 + $0xf0] sm:$0xff]
        %v588 = vld [vmem:[#allocation5 + $0xf8] sm:$0xff]
        %v589 = vld [vmem:[#allocation5 + $0x100] sm:$0xff]
        %v590 = vld [vmem:[#allocation5 + $0x108] sm:$0xff]
        %v591 = vld [vmem:[#allocation5 + $0x110] sm:$0xff]
        %v592 = vld [vmem:[#allocation5 + $0x118] sm:$0xff]
        %v593 = vld [vmem:[#allocation5 + $0x120] sm:$0xff]
        %v594 = vld [vmem:[#allocation5 + $0x128] sm:$0xff]
        %v595 = vld [vmem:[#allocation5 + $0x130] sm:$0xff]
        %v596 = vld [vmem:[#allocation5 + $0x138] sm:$0xff]
        %v597 = vld [vmem:[#allocation5 + $0x140] sm:$0xff]
        %v598 = vld [vmem:[#allocation5 + $0x148] sm:$0xff]
        %v599 = vld [vmem:[#allocation5 + $0x150] sm:$0xff]
        %v600 = vld [vmem:[#allocation5 + $0x158] sm:$0xff]
        %v601 = vld [vmem:[#allocation5 + $0x160] sm:$0xff]
        %v602 = vld [vmem:[#allocation5 + $0x168] sm:$0xff]
        %v603 = vld [vmem:[#allocation5 + $0x170] sm:$0xff]
        %v604 = vld [vmem:[#allocation5 + $0x178] sm:$0xff]
        %v605 = vld [vmem:[#allocation5 + $0x180] sm:$0xff]
        %v606 = vld [vmem:[#allocation5 + $0x188] sm:$0xff]
        %v607 = vld [vmem:[#allocation5 + $0x190] sm:$0xff]
        %v608 = vld [vmem:[#allocation5 + $0x198] sm:$0xff]
        %v609 = vld [vmem:[#allocation5 + $0x1a0] sm:$0xff]
        %v610 = vld [vmem:[#allocation5 + $0x1a8] sm:$0xff]
        %v611 = vld [vmem:[#allocation5 + $0x1b0] sm:$0xff]
        %v612 = vld [vmem:[#allocation5 + $0x1b8] sm:$0xff]
        %v613 = vld [vmem:[#allocation5 + $0x1c0] sm:$0xff]
        %v614 = vld [vmem:[#allocation5 + $0x1c8] sm:$0xff]
        %v615 = vld [vmem:[#allocation5 + $0x1d0] sm:$0xff]
        %v616 = vld [vmem:[#allocation5 + $0x1d8] sm:$0xff]
        %v617 = vld [vmem:[#allocation5 + $0x1e0] sm:$0xff]
        %v618 = vld [vmem:[#allocation5 + $0x1e8] sm:$0xff]
        %v619 = vld [vmem:[#allocation5 + $0x1f0] sm:$0xff]
        %v620 = vld [vmem:[#allocation5 + $0x1f8] sm:$0xff]
        %v685 = vunpack.c.l.b16 %v557
        %v686 = vunpack.c.h.b16 %v557
        %v687 = vunpack.c.l.b16 %v558
        %v688 = vunpack.c.h.b16 %v558
        %v689 = vunpack.c.l.b16 %v559
        %v690 = vunpack.c.h.b16 %v559
        %v691 = vunpack.c.l.b16 %v560
        %v692 = vunpack.c.h.b16 %v560
        %v693 = vunpack.c.l.b16 %v561
        %v694 = vunpack.c.h.b16 %v561
        %v695 = vunpack.c.l.b16 %v562
        %v696 = vunpack.c.h.b16 %v562
        %v697 = vunpack.c.l.b16 %v563
        %v698 = vunpack.c.h.b16 %v563
        %v699 = vunpack.c.l.b16 %v564
        %v700 = vunpack.c.h.b16 %v564
        %v701 = vunpack.c.l.b16 %v565
        %v702 = vunpack.c.h.b16 %v565
        %v703 = vunpack.c.l.b16 %v566
        %v704 = vunpack.c.h.b16 %v566
        %v705 = vunpack.c.l.b16 %v567
        %v706 = vunpack.c.h.b16 %v567
        %v707 = vunpack.c.l.b16 %v568
        %v708 = vunpack.c.h.b16 %v568
        %v709 = vunpack.c.l.b16 %v569
        %v710 = vunpack.c.h.b16 %v569
        %v711 = vunpack.c.l.b16 %v570
        %v712 = vunpack.c.h.b16 %v570
        %v713 = vunpack.c.l.b16 %v571
        %v714 = vunpack.c.h.b16 %v571
        %v715 = vunpack.c.l.b16 %v572
        %v716 = vunpack.c.h.b16 %v572
        %v717 = vunpack.c.l.b16 %v573
        %v718 = vunpack.c.h.b16 %v573
        %v719 = vunpack.c.l.b16 %v574
        %v720 = vunpack.c.h.b16 %v574
        %v721 = vunpack.c.l.b16 %v575
        %v722 = vunpack.c.h.b16 %v575
        %v723 = vunpack.c.l.b16 %v576
        %v724 = vunpack.c.h.b16 %v576
        %v725 = vunpack.c.l.b16 %v577
        %v726 = vunpack.c.h.b16 %v577
        %v727 = vunpack.c.l.b16 %v578
        %v728 = vunpack.c.h.b16 %v578
        %v729 = vunpack.c.l.b16 %v579
        %v730 = vunpack.c.h.b16 %v579
        %v731 = vunpack.c.l.b16 %v580
        %v732 = vunpack.c.h.b16 %v580
        %v733 = vunpack.c.l.b16 %v581
        %v734 = vunpack.c.h.b16 %v581
        %v735 = vunpack.c.l.b16 %v582
        %v736 = vunpack.c.h.b16 %v582
        %v737 = vunpack.c.l.b16 %v583
        %v738 = vunpack.c.h.b16 %v583
        %v739 = vunpack.c.l.b16 %v584
        %v740 = vunpack.c.h.b16 %v584
        %v741 = vunpack.c.l.b16 %v585
        %v742 = vunpack.c.h.b16 %v585
        %v743 = vunpack.c.l.b16 %v586
        %v744 = vunpack.c.h.b16 %v586
        %v745 = vunpack.c.l.b16 %v587
        %v746 = vunpack.c.h.b16 %v587
        %v747 = vunpack.c.l.b16 %v588
        %v748 = vunpack.c.h.b16 %v588
        %v749 = vunpack.c.l.b16 %v589
        %v750 = vunpack.c.h.b16 %v589
        %v751 = vunpack.c.l.b16 %v590
        %v752 = vunpack.c.h.b16 %v590
        %v753 = vunpack.c.l.b16 %v591
        %v754 = vunpack.c.h.b16 %v591
        %v755 = vunpack.c.l.b16 %v592
        %v756 = vunpack.c.h.b16 %v592
        %v757 = vunpack.c.l.b16 %v593
        %v758 = vunpack.c.h.b16 %v593
        %v759 = vunpack.c.l.b16 %v594
        %v760 = vunpack.c.h.b16 %v594
        %v761 = vunpack.c.l.b16 %v595
        %v762 = vunpack.c.h.b16 %v595
        %v763 = vunpack.c.l.b16 %v596
        %v764 = vunpack.c.h.b16 %v596
        %v765 = vunpack.c.l.b16 %v597
        %v766 = vunpack.c.h.b16 %v597
        %v767 = vunpack.c.l.b16 %v598
        %v768 = vunpack.c.h.b16 %v598
        %v769 = vunpack.c.l.b16 %v599
        %v770 = vunpack.c.h.b16 %v599
        %v771 = vunpack.c.l.b16 %v600
        %v772 = vunpack.c.h.b16 %v600
        %v773 = vunpack.c.l.b16 %v601
        %v774 = vunpack.c.h.b16 %v601
        %v775 = vunpack.c.l.b16 %v602
        %v776 = vunpack.c.h.b16 %v602
        %v777 = vunpack.c.l.b16 %v603
        %v778 = vunpack.c.h.b16 %v603
        %v779 = vunpack.c.l.b16 %v604
        %v780 = vunpack.c.h.b16 %v604
        %v781 = vunpack.c.l.b16 %v605
        %v782 = vunpack.c.h.b16 %v605
        %v783 = vunpack.c.l.b16 %v606
        %v784 = vunpack.c.h.b16 %v606
        %v785 = vunpack.c.l.b16 %v607
        %v786 = vunpack.c.h.b16 %v607
        %v787 = vunpack.c.l.b16 %v608
        %v788 = vunpack.c.h.b16 %v608
        %v789 = vunpack.c.l.b16 %v609
        %v790 = vunpack.c.h.b16 %v609
        %v791 = vunpack.c.l.b16 %v610
        %v792 = vunpack.c.h.b16 %v610
        %v793 = vunpack.c.l.b16 %v611
        %v794 = vunpack.c.h.b16 %v611
        %v795 = vunpack.c.l.b16 %v612
        %v796 = vunpack.c.h.b16 %v612
        %v797 = vunpack.c.l.b16 %v613
        %v798 = vunpack.c.h.b16 %v613
        %v799 = vunpack.c.l.b16 %v614
        %v800 = vunpack.c.h.b16 %v614
        %v801 = vunpack.c.l.b16 %v615
        %v802 = vunpack.c.h.b16 %v615
        %v803 = vunpack.c.l.b16 %v616
        %v804 = vunpack.c.h.b16 %v616
        %v805 = vunpack.c.l.b16 %v617
        %v806 = vunpack.c.h.b16 %v617
        %v807 = vunpack.c.l.b16 %v618
        %v808 = vunpack.c.h.b16 %v618
        %v809 = vunpack.c.l.b16 %v619
        %v810 = vunpack.c.h.b16 %v619
        %v811 = vunpack.c.l.b16 %v620
        %v812 = vunpack.c.h.b16 %v620
        %v813 = vpack.c.b16 %v687, %v685
        %v814 = vpack.c.b16 %v688, %v686
        %v815 = vpack.c.b16 %v691, %v689
        %v816 = vpack.c.b16 %v692, %v690
        %v817 = vpack.c.b16 %v695, %v693
        %v818 = vpack.c.b16 %v696, %v694
        %v819 = vpack.c.b16 %v699, %v697
        %v820 = vpack.c.b16 %v700, %v698
        %v821 = vpack.c.b16 %v703, %v701
        %v822 = vpack.c.b16 %v704, %v702
        %v823 = vpack.c.b16 %v707, %v705
        %v824 = vpack.c.b16 %v708, %v706
        %v825 = vpack.c.b16 %v711, %v709
        %v826 = vpack.c.b16 %v712, %v710
        %v827 = vpack.c.b16 %v715, %v713
        %v828 = vpack.c.b16 %v716, %v714
        %v829 = vpack.c.b16 %v719, %v717
        %v830 = vpack.c.b16 %v720, %v718
        %v831 = vpack.c.b16 %v723, %v721
        %v832 = vpack.c.b16 %v724, %v722
        %v833 = vpack.c.b16 %v727, %v725
        %v834 = vpack.c.b16 %v728, %v726
        %v835 = vpack.c.b16 %v731, %v729
        %v836 = vpack.c.b16 %v732, %v730
        %v837 = vpack.c.b16 %v735, %v733
        %v838 = vpack.c.b16 %v736, %v734
        %v839 = vpack.c.b16 %v739, %v737
        %v840 = vpack.c.b16 %v740, %v738
        %v841 = vpack.c.b16 %v743, %v741
        %v842 = vpack.c.b16 %v744, %v742
        %v843 = vpack.c.b16 %v747, %v745
        %v844 = vpack.c.b16 %v748, %v746
        %v845 = vpack.c.b16 %v751, %v749
        %v846 = vpack.c.b16 %v752, %v750
        %v847 = vpack.c.b16 %v755, %v753
        %v848 = vpack.c.b16 %v756, %v754
        %v849 = vpack.c.b16 %v759, %v757
        %v850 = vpack.c.b16 %v760, %v758
        %v851 = vpack.c.b16 %v763, %v761
        %v852 = vpack.c.b16 %v764, %v762
        %v853 = vpack.c.b16 %v767, %v765
        %v854 = vpack.c.b16 %v768, %v766
        %v855 = vpack.c.b16 %v771, %v769
        %v856 = vpack.c.b16 %v772, %v770
        %v857 = vpack.c.b16 %v775, %v773
        %v858 = vpack.c.b16 %v776, %v774
        %v859 = vpack.c.b16 %v779, %v777
        %v860 = vpack.c.b16 %v780, %v778
        %v861 = vpack.c.b16 %v783, %v781
        %v862 = vpack.c.b16 %v784, %v782
        %v863 = vpack.c.b16 %v787, %v785
        %v864 = vpack.c.b16 %v788, %v786
        %v865 = vpack.c.b16 %v791, %v789
        %v866 = vpack.c.b16 %v792, %v790
        %v867 = vpack.c.b16 %v795, %v793
        %v868 = vpack.c.b16 %v796, %v794
        %v869 = vpack.c.b16 %v799, %v797
        %v870 = vpack.c.b16 %v800, %v798
        %v871 = vpack.c.b16 %v803, %v801
        %v872 = vpack.c.b16 %v804, %v802
        %v873 = vpack.c.b16 %v807, %v805
        %v874 = vpack.c.b16 %v808, %v806
        %v875 = vpack.c.b16 %v811, %v809
        %v876 = vpack.c.b16 %v812, %v810
        %941 = vmatprep.subr.bf16.mxu0 %v828
        %942 = vmatpush1.bf16.msra.mxu0 %v827
        %943 = vmatprep.subr.bf16.mxu0 %v826
        %944 = vmatpush1.bf16.msra.mxu0 %v825
        %945 = vmatprep.subr.bf16.mxu0 %v824
        %946 = vmatpush1.bf16.msra.mxu0 %v823
        %947 = vmatprep.subr.bf16.mxu0 %v822
        %948 = vmatpush1.bf16.msra.mxu0 %v821
        %949 = vmatprep.subr.bf16.mxu0 %v820
        %950 = vmatpush1.bf16.msra.mxu0 %v819
        %951 = vmatprep.subr.bf16.mxu0 %v818
        %952 = vmatpush1.bf16.msra.mxu0 %v817
        %953 = vmatprep.subr.bf16.mxu0 %v816
        %954 = vmatpush1.bf16.msra.mxu0 %v815
        %955 = vmatprep.subr.bf16.mxu0 %v814
        %956 = vmatpush1.bf16.msra.mxu0 %v813
        %957 = vmatprep.subr.bf16.mxu0 %v844
        %958 = vmatpush2.bf16.msra.mxu0 %v843
        %959 = vmatprep.subr.bf16.mxu0 %v842
        %960 = vmatpush2.bf16.msra.mxu0 %v841
        %961 = vmatprep.subr.bf16.mxu0 %v840
        %962 = vmatpush2.bf16.msra.mxu0 %v839
        %963 = vmatprep.subr.bf16.mxu0 %v838
        %964 = vmatpush2.bf16.msra.mxu0 %v837
        %965 = vmatprep.subr.bf16.mxu0 %v836
        %966 = vmatpush2.bf16.msra.mxu0 %v835
        %967 = vmatprep.subr.bf16.mxu0 %v834
        %968 = vmatpush2.bf16.msra.mxu0 %v833
        %969 = vmatprep.subr.bf16.mxu0 %v832
        %970 = vmatpush2.bf16.msra.mxu0 %v831
        %971 = vmatprep.subr.bf16.mxu0 %v830
        %972 = vmatpush2.bf16.msra.mxu0 %v829
        %973 = vmatprep.mubr.bf16.mxu0 %v554
        %974 = vmatmul.mubr.bf16.gmra.mxu0 %v553
        %v975 = vpop.f32.mrf.mxu0
        %v976 = vadd.f32 0.0, %v975
        %v977 = vpop.f32.mrf.mxu0
        %v978 = vadd.f32 0.0, %v977
        %v979 = vpop.f32.mrf.mxu0
        %v980 = vpop.f32.mrf.mxu0
        %981 = vdwg.mxu0
        %982 = vmatprep.subr.bf16.mxu0 %v860
        %983 = vmatpush1.bf16.msra.mxu0 %v859
        %984 = vmatprep.subr.bf16.mxu0 %v858
        %985 = vmatpush1.bf16.msra.mxu0 %v857
        %986 = vmatprep.subr.bf16.mxu0 %v856
        %987 = vmatpush1.bf16.msra.mxu0 %v855
        %988 = vmatprep.subr.bf16.mxu0 %v854
        %989 = vmatpush1.bf16.msra.mxu0 %v853
        %990 = vmatprep.subr.bf16.mxu0 %v852
        %991 = vmatpush1.bf16.msra.mxu0 %v851
        %992 = vmatprep.subr.bf16.mxu0 %v850
        %993 = vmatpush1.bf16.msra.mxu0 %v849
        %994 = vmatprep.subr.bf16.mxu0 %v848
        %995 = vmatpush1.bf16.msra.mxu0 %v847
        %996 = vmatprep.subr.bf16.mxu0 %v846
        %997 = vmatpush1.bf16.msra.mxu0 %v845
        %998 = vmatprep.subr.bf16.mxu0 %v876
        %999 = vmatpush2.bf16.msra.mxu0 %v875
        %1000 = vmatprep.subr.bf16.mxu0 %v874
        %1001 = vmatpush2.bf16.msra.mxu0 %v873
        %1002 = vmatprep.subr.bf16.mxu0 %v872
        %1003 = vmatpush2.bf16.msra.mxu0 %v871
        %1004 = vmatprep.subr.bf16.mxu0 %v870
        %1005 = vmatpush2.bf16.msra.mxu0 %v869
        %1006 = vmatprep.subr.bf16.mxu0 %v868
        %1007 = vmatpush2.bf16.msra.mxu0 %v867
        %1008 = vmatprep.subr.bf16.mxu0 %v866
        %1009 = vmatpush2.bf16.msra.mxu0 %v865
        %1010 = vmatprep.subr.bf16.mxu0 %v864
        %1011 = vmatpush2.bf16.msra.mxu0 %v863
        %1012 = vmatprep.subr.bf16.mxu0 %v862
        %1013 = vmatpush2.bf16.msra.mxu0 %v861
        %1014 = vmatprep.mubr.bf16.mxu0 %v556
        %1015 = vmatmul.mubr.bf16.gmra.mxu0 %v555
        %v1016 = vpop.f32.mrf.mxu0
        %v1017 = vadd.f32 %v976, %v1016
        %v1018 = vpop.f32.mrf.mxu0
        %v1019 = vadd.f32 %v978, %v1018
        %v1020 = vpop.f32.mrf.mxu0
        %v1021 = vpop.f32.mrf.mxu0
        %1022 = vdwg.mxu0
        %v1023 = vxor.u32 %v1017, 2147483648
        %v1024 = vxor.u32 %v1019, 2147483648
        %v1025 = vmul.f32 %v1023, 1.442695
        %v1026 = vpow.pop %v1025
        %v1027 = vmul.f32 %v1024, 1.442695
        %v1028 = vpow.pop %v1027
        %v1029 = vadd.f32 %v1026, 1.0
        %v1030 = vadd.f32 %v1028, 1.0
        %v1031 = vrcp.pop %v1029
        %v1032 = vmul.f32 1.0, %v1031
        %v1033 = vrcp.pop %v1030
        %v1034 = vmul.f32 1.0, %v1033
        %v1035 = vlaneseq
        %v1036 = vshrl.u32 %v1035, 7
        %v1037 = vsub.s32 0, %v1036
        %v1038 = vrot.slane %v1032, %v1037
        %v1039 = vlaneseq
        %v1040 = vshrl.u32 %v1039, 7
        %v1041 = vsub.s32 0, %v1040
        %v1042 = vrot.slane %v1034, %v1041
        %v1043 = vmul.f32 %v507, %v1038
        %v1044 = vmul.f32 %v508, %v1042
        %v1045 = vmul.f32 %v509, %v1038
        %v1046 = vmul.f32 %v510, %v1042
        %v1047 = vmul.f32 %v511, %v1038
        %v1048 = vmul.f32 %v512, %v1042
        %v1049 = vmul.f32 %v513, %v1038
        %v1050 = vmul.f32 %v514, %v1042
        %1051 = vst [vmem:[%s230] sm:$0xff] %v1043
        %1052 = vst [vmem:[%s230 + $0x8] sm:$0xff] %v1044
        %1053 = vst [vmem:[%s230 + $0x10] sm:$0xff] %v1045
        %1054 = vst [vmem:[%s230 + $0x18] sm:$0xff] %v1046
        %1055 = vst [vmem:[%s230 + $0x20] sm:$0xff] %v1047
        %1056 = vst [vmem:[%s230 + $0x28] sm:$0xff] %v1048
        %1057 = vst [vmem:[%s230 + $0x30] sm:$0xff] %v1049
        %1058 = vst [vmem:[%s230 + $0x38] sm:$0xff] %v1050
        %s1059 = sand.u32 %s119, 1
        %s1060 = scalar_lea.sflag [#allocation4], %s1059
        %s1061 = sand.u32 %s119, 1
        %s1062 = smul.addr %s1061, 64
        %s1063 = scalar_lea.vmem [#allocation7], %s1062
        // Predicated region
        $region45: #{tpu_custom_call.1} parent=35 // pred_check
          %p1064 = pneg %p129
        $region46: #{tpu_custom_call.1} parent=35 // pred_check_branch
          %1066 = sbr.rel (%p1064) target = $region48
        $region47: #{tpu_custom_call.1} parent=35 // pred_region
          %s1068 = ssub.s32 1024, 1024
          %1069 = vsyncadd %s1060, %s1068
          %s1070 = smul.addr %s22, 8
          %s1071 = smul.addr %s1070, 128
          %s1072 = scalar_lea.hbm %s4, %s1071
          %s1073 = sshll.u32 %s1063, 4
          %s1074 = int_to_ptr.vmem [resolvable:$true] %s1073
          %1079 = dma.vmem_to_hbm [thread:$0]  %s1074, 1024, %s1072, %s1060, 256, 256, 16
        $region48: #{tpu_custom_call.1} parent=35 // pred_fallthru
          _
      $region36: #{tpu_custom_call.1} parent=5 // pred_fallthru
        _
      %p1080 = scmp.le.s32.totalorder 2, %s17
      // Predicated region
      $region49: #{tpu_custom_call.1} parent=5 // pred_check
        %p1081 = pneg %p1080
      $region50: #{tpu_custom_call.1} parent=5 // pred_check_branch
        %1083 = sbr.rel (%p1081) target = $region52
      $region51: #{tpu_custom_call.1} parent=5 // pred_region
        %s1084 = ssub.s32 %s17, 2
        // Predicated region
        $region53: #{tpu_custom_call.1} parent=51 // pred_check
          %p1085 = pneg %p135
        $region54: #{tpu_custom_call.1} parent=51 // pred_check_branch
          %1087 = sbr.rel (%p1085) target = $region56
        $region55: #{tpu_custom_call.1} parent=51 // pred_region
          %s1088 = sand.u32 %s120, 1
          %s1089 = scalar_lea.sflag [#allocation4], %s1088
          %s1090 = sand.u32 %s120, 1
          %s1091 = smul.addr %s1090, 64
          %s1092 = scalar_lea.vmem [#allocation7], %s1091
          %1093 = dma.done %s1089, 1024
        $region56: #{tpu_custom_call.1} parent=51 // pred_fallthru
          _
      $region52: #{tpu_custom_call.1} parent=5 // pred_fallthru
        _
    $region6: #{tpu_custom_call.1} parent=1 // loop_footer
      %s21 = sadd.s32 1, %s17
    $region7: #{tpu_custom_call.1} parent=1 // loop_footer_branch
      %16 = sbr.rel target = $region3
    $region8: #{tpu_custom_call.1} parent=1 // loop_exit
      _
    %1094 = vsyncpa [#allocation3], 1
    %s1095 = scalar_lea.sflag [#allocation3], 1
    %1096 = vsyncpa %s1095, 1
    %1097 = vsyncpa [#allocation6], 1
    %1098 = vsyncpa [#allocation4], 1
    %s1099 = scalar_lea.sflag [#allocation4], 1
    %1100 = vsyncpa %s1099, 1

</llo_original>
